<compile_context>
chip_gen: v7x
topology: tpu7x:2x2x1
jax: 0.10.0
libtpu: 0.0.40
codegen_flags: <defaults>
</compile_context>

<pallas_src>
import functools

import jax
import jax.numpy as jnp
from jax.experimental import pallas as pl
from jax.experimental.pallas import tpu as pltpu


def _ce_label_smooth_kernel(inputs_ref, targets_ref, loss_ref, *,
                            num_classes, epsilon):
    # inputs_ref : (TB, C) logits block in VMEM
    # targets_ref: (TB, 1) int32 labels block in VMEM
    # loss_ref   : (TB, 1) f32 per-sample loss block in VMEM
    x = inputs_ref[...].astype(jnp.float32)                       # (TB, C)
    t = targets_ref[...]                                          # (TB, 1)

    # One pass over x: row max, row sum, and x[target] via iota-compare mask.
    m = jnp.max(x, axis=1, keepdims=True)                         # (TB, 1)
    sum_x = jnp.sum(x, axis=1, keepdims=True)                     # (TB, 1)
    class_ids = jax.lax.broadcasted_iota(jnp.int32, x.shape, 1)
    x_t = jnp.sum(jnp.where(class_ids == t, x, 0.0),
                  axis=1, keepdims=True)                          # (TB, 1)

    # exp path: (x - m) feeds only the exp/sum-exp.
    lse = jnp.log(jnp.sum(jnp.exp(x - m), axis=1, keepdims=True))  # (TB, 1)

    # log_softmax identities:
    #   logp_c       = x_c - m - lse
    #   sum_c logp_c = sum_x - C*(m + lse)
    #   logp_target  = x_t - m - lse
    logp_t = x_t - m - lse
    sum_logp = sum_x - num_classes * (m + lse)

    loss_ref[...] = (-(1.0 - epsilon) * logp_t
                     - (epsilon / num_classes) * sum_logp)


def _sublane_multiple(itemsize):
    return {4: 8, 2: 16, 1: 32}.get(int(itemsize), 8)


def _pick_tile_rows(batch, num_classes, itemsize,
                    target_bytes=2 * 1024 * 1024):
    """Largest sublane-multiple row tile whose double-buffered blocks fit ~target_bytes."""
    lanes_c = ((num_classes + 127) // 128) * 128       # lane padding to 128
    # per row: logits block + lane-padded int32 targets + lane-padded f32 output,
    # x2 for BlockSpec double buffering.
    bytes_per_row = 2 * (itemsize * lanes_c + 4 * 128 + 4 * 128)
    sub = _sublane_multiple(itemsize)
    rows = target_bytes // bytes_per_row
    rows = max(sub, (rows // sub) * sub)
    rows = min(rows, max(sub, (batch // sub) * sub))   # don't exceed the batch
    return int(rows)


def cross_entropy_label_smooth(inputs, targets, *, epsilon=0.1, reduction=True):
    """inputs: (B, C) logits, targets: (B,) int labels.

    Returns scalar mean loss (reduction=True) or the (B,) per-sample loss vector.
    """
    B, C = inputs.shape
    tb = _pick_tile_rows(B, C, inputs.dtype.itemsize)
    nb = pl.cdiv(B, tb)
    targets_2d = targets.reshape(B, 1).astype(jnp.int32)

    kernel = functools.partial(
        _ce_label_smooth_kernel, num_classes=C, epsilon=float(epsilon))

    per_sample = pl.pallas_call(
        kernel,
        out_shape=jax.ShapeDtypeStruct((B, 1), jnp.float32),
        grid_spec=pltpu.PrefetchScalarGridSpec(
            num_scalar_prefetch=0,
            grid=(nb,),
            in_specs=[
                pl.BlockSpec((tb, C), lambda i: (i, 0)),
                pl.BlockSpec((tb, 1), lambda i: (i, 0)),
            ],
            out_specs=pl.BlockSpec((tb, 1), lambda i: (i, 0)),
        ),
        compiler_params=pltpu.CompilerParams(
            dimension_semantics=("parallel",)),
    )(inputs, targets_2d)

    per_sample = per_sample[:, 0]
    if reduction:
        return jnp.mean(per_sample)       # tiny (B,) reduce, done in plain JAX
    return per_sample


def cross_entropy_label_smooth_ref(inputs, targets, *, epsilon=0.1,
                                   reduction=True):
    """Pure-JAX reference matching the PyTorch forward."""
    num_classes = inputs.shape[1]
    log_probs = jax.nn.log_softmax(inputs.astype(jnp.float32), axis=1)
    onehot = jax.nn.one_hot(targets, num_classes, dtype=jnp.float32)
    smoothed = (1.0 - epsilon) * onehot + epsilon / num_classes
    loss = jnp.sum(-smoothed * log_probs, axis=1)
    return jnp.mean(loss) if reduction else loss


if __name__ == "__main__":
    key = jax.random.PRNGKey(0)
    k1, k2 = jax.random.split(key)

    # B=12 with 8-row tiles -> 2 grid steps, last block has a padded tail.
    B, num_classes, epsilon = 12, 40, 0.1
    inputs = jax.random.normal(k1, (B, num_classes), dtype=jnp.float32)
    targets = jax.random.randint(k2, (B,), 0, num_classes, dtype=jnp.int32)

    loss = cross_entropy_label_smooth(inputs, targets, epsilon=epsilon)
    jax.block_until_ready(loss)
    ref = cross_entropy_label_smooth_ref(inputs, targets, epsilon=epsilon)
    assert jnp.allclose(loss, ref, atol=1e-5, rtol=1e-5), (loss, ref)

    per = cross_entropy_label_smooth(inputs, targets, epsilon=epsilon,
                                     reduction=False)
    jax.block_until_ready(per)
    per_ref = cross_entropy_label_smooth_ref(inputs, targets, epsilon=epsilon,
                                             reduction=False)
    assert jnp.allclose(per, per_ref, atol=1e-5, rtol=1e-5), (per, per_ref)

    print("KERNEL_OK")
</pallas_src>

<mosaic_0001>
module attributes {stable_mosaic.version = 11 : i64} {
  func.func @_ce_label_smooth_kernel(%arg0: i32, %arg1: memref<8x40xf32, #tpu.memory_space<vmem>>, %arg2: memref<8x1xi32, #tpu.memory_space<vmem>>, %arg3: memref<8x1xf32, #tpu.memory_space<vmem>>) attributes {dimension_semantics = [#tpu.dimension_semantics<parallel>], iteration_bounds = array<i64: 2>, scalar_prefetch = 0 : i64, scratch_operands = 0 : i64, tpu.core_type = #tpu.core_type<tc>, window_params = [{transform_indices = @transform_0, window_bounds = array<i64: 8, 40>}, {transform_indices = @transform_1, window_bounds = array<i64: 8, 1>}, {transform_indices = @transform_2, window_bounds = array<i64: 8, 1>}]} {
    %c0 = arith.constant 0 : index
    %c0_0 = arith.constant 0 : index
    %0 = vector.load %arg1[%c0, %c0_0] : memref<8x40xf32, #tpu.memory_space<vmem>>, vector<8x40xf32>
    %c0_1 = arith.constant 0 : index
    %c0_2 = arith.constant 0 : index
    %1 = vector.load %arg2[%c0_1, %c0_2] : memref<8x1xi32, #tpu.memory_space<vmem>>, vector<8x1xi32>
    %cst = arith.constant dense<0xFF800000> : vector<8xf32>
    %2 = vector.multi_reduction <maximumf>, %0, %cst [1] : vector<8x40xf32> to vector<8xf32>
    %3 = vector.shape_cast %2 : vector<8xf32> to vector<8x1xf32>
    %cst_3 = arith.constant dense<0.000000e+00> : vector<8xf32>
    %4 = vector.multi_reduction <add>, %0, %cst_3 [1] : vector<8x40xf32> to vector<8xf32>
    %5 = vector.shape_cast %4 : vector<8xf32> to vector<8x1xf32>
    %6 = tpu.iota {dimensions = array<i32: 1>} : vector<8x40xi32>
    %7 = vector.broadcast %1 : vector<8x1xi32> to vector<8x40xi32>
    %8 = arith.cmpi eq, %6, %7 : vector<8x40xi32>
    %cst_4 = arith.constant 0.000000e+00 : f32
    %9 = vector.broadcast %cst_4 : f32 to vector<8x40xf32>
    %10 = arith.select %8, %0, %9 : vector<8x40xi1>, vector<8x40xf32>
    %cst_5 = arith.constant dense<0.000000e+00> : vector<8xf32>
    %11 = vector.multi_reduction <add>, %10, %cst_5 [1] : vector<8x40xf32> to vector<8xf32>
    %12 = vector.shape_cast %11 : vector<8xf32> to vector<8x1xf32>
    %13 = vector.broadcast %3 : vector<8x1xf32> to vector<8x40xf32>
    %14 = arith.subf %0, %13 : vector<8x40xf32>
    %15 = math.exp %14 : vector<8x40xf32>
    %cst_6 = arith.constant dense<0.000000e+00> : vector<8xf32>
    %16 = vector.multi_reduction <add>, %15, %cst_6 [1] : vector<8x40xf32> to vector<8xf32>
    %17 = vector.shape_cast %16 : vector<8xf32> to vector<8x1xf32>
    %18 = math.log %17 : vector<8x1xf32>
    %19 = arith.subf %12, %3 : vector<8x1xf32>
    %20 = arith.subf %19, %18 : vector<8x1xf32>
    %21 = arith.addf %3, %18 : vector<8x1xf32>
    %cst_7 = arith.constant 4.000000e+01 : f32
    %22 = vector.broadcast %cst_7 : f32 to vector<8x1xf32>
    %23 = arith.mulf %22, %21 : vector<8x1xf32>
    %24 = arith.subf %5, %23 : vector<8x1xf32>
    %cst_8 = arith.constant -0.899999976 : f32
    %25 = vector.broadcast %cst_8 : f32 to vector<8x1xf32>
    %26 = arith.mulf %25, %20 : vector<8x1xf32>
    %cst_9 = arith.constant 2.500000e-03 : f32
    %27 = vector.broadcast %cst_9 : f32 to vector<8x1xf32>
    %28 = arith.mulf %27, %24 : vector<8x1xf32>
    %29 = arith.subf %26, %28 : vector<8x1xf32>
    %c0_10 = arith.constant 0 : index
    %c0_11 = arith.constant 0 : index
    %30 = vector.load %arg3[%c0_10, %c0_11] : memref<8x1xf32, #tpu.memory_space<vmem>>, vector<8x1xf32>
    tpu.vector_store %arg3[%c0_10, %c0_11], %29 {strides = array<i32>} : memref<8x1xf32, #tpu.memory_space<vmem>>, vector<8x1xf32>,
    return
  }
  func.func @transform_0(%arg0: i32) -> (i32, i32) {
    %c0_i32 = arith.constant 0 : i32
    %c0_i32_0 = arith.constant 0 : i32
    return %arg0, %c0_i32 : i32, i32
  }
  func.func @transform_1(%arg0: i32) -> (i32, i32) {
    %c0_i32 = arith.constant 0 : i32
    %c0_i32_0 = arith.constant 0 : i32
    return %arg0, %c0_i32 : i32, i32
  }
  func.func @transform_2(%arg0: i32) -> (i32, i32) {
    %c0_i32 = arith.constant 0 : i32
    %c0_i32_0 = arith.constant 0 : i32
    return %arg0, %c0_i32 : i32, i32
  }
}

</mosaic_0001>

<llo_original>
// kernel: tpu_custom_call.1
$region0: #{tpu_custom_call.1}
  #allocation0 [shape = 'u32[]', space=smem, size = 0x4, offset = 0x4, fixed_abs, tag = 'smem constant byte address 0x4 - core index']
  #allocation1 [shape = 'u32[144,128]{1,0:T(1,128)}', space=vmem, size = 0x12000, scoped, tag = 'internal scratch']
  %s0 = inlined_call_operand.vmem [shape: f32[12,40], index: 0, kind: input, shape index: {}]
  %s1 = inlined_call_operand.vmem [shape: s32[12,1], index: 1, kind: input, shape index: {}]
  %s2 = inlined_call_operand.vmem [shape: f32[12,1], index: 2, kind: output, shape index: {}]
  %s3 = sld [smem:[#allocation0]]
  $region41: #{tpu_custom_call.1} parent=0
    _
  %s5 = ssub.s32 1, %s3
  %s6 = scalar_select 0, %s5, %s3
  loop: start=0, step=1, limit=4
  $region2: #{tpu_custom_call.1} parent=0 // loop_pre_header
    _
  $region3: #{tpu_custom_call.1} parent=0 // loop_header
    %s8 = sphi 0, %s12
    %p9 = scmp.ge.s32.totalorder %s8, 4
    %s18 = sphi 0, %s20
    %s21 = sphi 0, %s18
    %s22 = sphi 0, %s21
    %s38 = sphi 0, %s22
    %s44 = sphi 0, %s46
    %s47 = sphi 0, %s44
    %s48 = sphi 0, %s47
    %s64 = sphi 0, %s48
    %s70 = sphi 0, %s72
    %s73 = sphi 0, %s70
    %s74 = sphi 0, %s73
    %s90 = sphi 0, %s74
  $region4: #{tpu_custom_call.1} parent=0 // loop_header_branch
    %11 = sbr.rel (%p9) target = $region8
  $region5: #{tpu_custom_call.1} parent=0 // loop_body
    %s13 = ssub.s32 %s8, 1
    %s14 = ssub.s32 %s8, 2
    %s15 = sadd.s32 %s8, 1
    %s16 = ssub.s32 %s8, %s15
    %p17 = scmp.eq.s32.totalorder %s16, 0
    %s19 = sadd.s32 %s18, 1
    %s20 = scalar_select %p17, %s18, %s19
    %p23 = pneg %p17
    %p24 = scmp.eq.s32.totalorder %s8, 1
    %p25 = por %p23, %p24
    %p26 = scmp.ne.s32.totalorder %s18, %s21
    %p27 = scmp.eq.s32.totalorder %s8, 0
    %p28 = por %p26, %p27
    %p29 = scmp.ne.s32.totalorder %s18, %s21
    %p30 = scmp.eq.s32.totalorder %s13, 1
    %p31 = por %p29, %p30
    %p32 = scmp.ne.s32.totalorder %s21, %s22
    %p33 = scmp.eq.s32.totalorder %s13, 0
    %p34 = por %p32, %p33
    %p35 = scmp.ne.s32.totalorder %s21, %s22
    %p36 = scmp.eq.s32.totalorder %s14, 1
    %p37 = por %p35, %p36
    %p39 = scmp.ne.s32.totalorder %s22, %s38
    %p40 = scmp.eq.s32.totalorder %s14, 0
    %p41 = por %p39, %p40
    %s42 = ssub.s32 %s8, %s15
    %p43 = scmp.eq.s32.totalorder %s42, 0
    %s45 = sadd.s32 %s44, 1
    %s46 = scalar_select %p43, %s44, %s45
    %p49 = pneg %p43
    %p50 = scmp.eq.s32.totalorder %s8, 1
    %p51 = por %p49, %p50
    %p52 = scmp.ne.s32.totalorder %s44, %s47
    %p53 = scmp.eq.s32.totalorder %s8, 0
    %p54 = por %p52, %p53
    %p55 = scmp.ne.s32.totalorder %s44, %s47
    %p56 = scmp.eq.s32.totalorder %s13, 1
    %p57 = por %p55, %p56
    %p58 = scmp.ne.s32.totalorder %s47, %s48
    %p59 = scmp.eq.s32.totalorder %s13, 0
    %p60 = por %p58, %p59
    %p61 = scmp.ne.s32.totalorder %s47, %s48
    %p62 = scmp.eq.s32.totalorder %s14, 1
    %p63 = por %p61, %p62
    %p65 = scmp.ne.s32.totalorder %s48, %s64
    %p66 = scmp.eq.s32.totalorder %s14, 0
    %p67 = por %p65, %p66
    %s68 = ssub.s32 %s8, %s15
    %p69 = scmp.eq.s32.totalorder %s68, 0
    %s71 = sadd.s32 %s70, 1
    %s72 = scalar_select %p69, %s70, %s71
    %p75 = pneg %p69
    %p76 = scmp.eq.s32.totalorder %s8, 1
    %p77 = por %p75, %p76
    %p78 = scmp.ne.s32.totalorder %s70, %s73
    %p79 = scmp.eq.s32.totalorder %s8, 0
    %p80 = por %p78, %p79
    %p81 = scmp.ne.s32.totalorder %s70, %s73
    %p82 = scmp.eq.s32.totalorder %s13, 1
    %p83 = por %p81, %p82
    %p84 = scmp.ne.s32.totalorder %s73, %s74
    %p85 = scmp.eq.s32.totalorder %s13, 0
    %p86 = por %p84, %p85
    %p87 = scmp.ne.s32.totalorder %s73, %s74
    %p88 = scmp.eq.s32.totalorder %s14, 1
    %p89 = por %p87, %p88
    %p91 = scmp.ne.s32.totalorder %s74, %s90
    %p92 = scmp.eq.s32.totalorder %s14, 0
    %p93 = por %p91, %p92
    %p94 = scmp.le.s32.totalorder 1, %s8
    %p95 = scmp.lt.s32.totalorder %s8, 3
    %p96 = pnand %p94, %p95
    %p97 = pneg %p96
    // Predicated region
    $region9: #{tpu_custom_call.1} parent=5 // pred_check
      _
    $region10: #{tpu_custom_call.1} parent=5 // pred_check_branch
      %99 = sbr.rel (%p96) target = $region12
    $region11: #{tpu_custom_call.1} parent=5 // pred_region
      %s100 = ssub.s32 %s8, 1
    $region12: #{tpu_custom_call.1} parent=5 // pred_fallthru
      _
    %p101 = scmp.lt.s32.totalorder %s8, 2
    // Predicated region
    $region13: #{tpu_custom_call.1} parent=5 // pred_check
      %p102 = pneg %p101
    $region14: #{tpu_custom_call.1} parent=5 // pred_check_branch
      %104 = sbr.rel (%p102) target = $region16
    $region15: #{tpu_custom_call.1} parent=5 // pred_region
      // Predicated region
      $region17: #{tpu_custom_call.1} parent=15 // pred_check
        %p105 = pneg %p28
      $region18: #{tpu_custom_call.1} parent=15 // pred_check_branch
        %107 = sbr.rel (%p105) target = $region20
      $region19: #{tpu_custom_call.1} parent=15 // pred_region
        %p108 = scmp.lt.s32.totalorder %s8, 1
        %s109 = scalar_select %p108, %s8, 1
        %s110 = smul.addr %s109, 8
        %s111 = scalar_lea.vmem %s0, %s110
      $region20: #{tpu_custom_call.1} parent=15 // pred_fallthru
        _
      // Predicated region
      $region21: #{tpu_custom_call.1} parent=15 // pred_check
        %p112 = pneg %p54
      $region22: #{tpu_custom_call.1} parent=15 // pred_check_branch
        %114 = sbr.rel (%p112) target = $region24
      $region23: #{tpu_custom_call.1} parent=15 // pred_region
        %p115 = scmp.lt.s32.totalorder %s8, 1
        %s116 = scalar_select %p115, %s8, 1
        %s117 = smul.addr %s116, 8
        %s118 = scalar_lea.vmem %s1, %s117
      $region24: #{tpu_custom_call.1} parent=15 // pred_fallthru
        _
    $region16: #{tpu_custom_call.1} parent=5 // pred_fallthru
      _
    %p119 = scmp.le.s32.totalorder 1, %s8
    %p120 = scmp.lt.s32.totalorder %s8, 3
    %p121 = pnand %p119, %p120
    %p122 = pneg %p121
    // Predicated region
    $region25: #{tpu_custom_call.1} parent=5 // pred_check
      _
    $region26: #{tpu_custom_call.1} parent=5 // pred_check_branch
      %124 = sbr.rel (%p121) target = $region28
    $region27: #{tpu_custom_call.1} parent=5 // pred_region
      %s125 = ssub.s32 %s8, 1
      %p126 = scmp.lt.s32.totalorder %s13, 1
      %s127 = scalar_select %p126, %s13, 1
      %s128 = smul.addr %s127, 8
      %s129 = scalar_lea.vmem %s0, %s128
      %p130 = pneg %p34
      %p131 = pneg %p31
      %p132 = scmp.lt.s32.totalorder %s13, 1
      %s133 = scalar_select %p132, %s13, 1
      %s134 = smul.addr %s133, 8
      %s135 = scalar_lea.vmem %s1, %s134
      %p136 = pneg %p60
      %p137 = pneg %p57
      %p138 = pneg %p86
      %p139 = pneg %p83
      %p140 = scmp.lt.s32.totalorder %s13, 1
      %s141 = scalar_select %p140, %s13, 1
      %s142 = smul.addr %s141, 8
      %s143 = scalar_lea.vmem %s2, %s142
      %p144 = scmp.lt.s32.totalorder %s13, 1
      %s145 = scalar_select %p144, %s13, 1
      %s146 = smul.addr %s145, 8
      %s147 = scalar_lea.vmem %s0, %s146
      %p148 = scmp.lt.s32.totalorder %s13, 1
      %s149 = scalar_select %p148, %s13, 1
      %s150 = smul.addr %s149, 8
      %s151 = scalar_lea.vmem %s1, %s150
      %p152 = scmp.lt.s32.totalorder %s13, 1
      %s153 = scalar_select %p152, %s13, 1
      %s154 = smul.addr %s153, 8
      %s155 = scalar_lea.vmem %s2, %s154
      %v156 = vld [vmem:[%s147] sm:$0xff]
      %v157 = vld [vmem:[%s151] sm:$0xff]
      %vm158 = vcmask 326656
      %v159 = vsel %vm158, %v156, -inf
      %160 = vmax.xlane.f32.xlu0 %v159
      %v161 = vpop.xlane.xlu0 %160
      %v162 = vsel %vm158, %v156, 0.0
      %163 = vadd.xlane.f32.xlu0 %v162
      %v164 = vpop.xlane.xlu0 %163
      %v165 = vlaneseq
      %v166 = vand.u32 %v165, 127
      %167 = vset.pattern.permute.xlu0 0
      %168 = vperm.xlu0 %167, %v157
      %v169 = vpop.permute.xlu0 %168
      %vm170 = vcmp.eq.s32.totalorder %v166, %v169
      %v171 = vsel %vm170, %v156, 0.0
      %v172 = vsel %vm158, %v171, 0.0
      %173 = vadd.xlane.f32.xlu0 %v172
      %v174 = vpop.xlane.xlu0 %173
      %v175 = vsub.f32 %v156, %v161
      %v176 = vmul.f32 %v175, 1.442695
      %v177 = vpow.pop %v176
      %v178 = vsel %vm158, %v177, 0.0
      %179 = vadd.xlane.f32.xlu0 %v178
      %v180 = vpop.xlane.xlu0 %179
      %v181 = vlog2.pop %v180
      %v182 = vmul.f32 %v181, 0.6931472
      %v183 = vsub.f32 %v174, %v161
      %v184 = vsub.f32 %v183, %v182
      %v185 = vadd.f32 %v161, %v182
      %v186 = vmul.f32 %v185, 40.0
      %v187 = vsub.f32 %v164, %v186
      %v188 = vmul.f32 %v184, -0.9
      %v189 = vmul.f32 %v187, 0.0025
      %v190 = vsub.f32 %v188, %v189
      %vm191 = vcmask 7168
      %192 = vst.msk [vmem:[%s155] sm:$0xff] %vm191, %v190
      %p193 = scmp.lt.s32.totalorder %s13, 1
      %s194 = scalar_select %p193, %s13, 1
      %s195 = smul.addr %s194, 8
      %s196 = scalar_lea.vmem %s2, %s195
      // Predicated region
      $region29: #{tpu_custom_call.1} parent=27 // pred_check
        %p197 = pneg %p83
      $region30: #{tpu_custom_call.1} parent=27 // pred_check_branch
        %199 = sbr.rel (%p197) target = $region32
      $region31: #{tpu_custom_call.1} parent=27 // pred_region
        _
      $region32: #{tpu_custom_call.1} parent=27 // pred_fallthru
        _
    $region28: #{tpu_custom_call.1} parent=5 // pred_fallthru
      _
    %p200 = scmp.le.s32.totalorder 2, %s8
    // Predicated region
    $region33: #{tpu_custom_call.1} parent=5 // pred_check
      %p201 = pneg %p200
    $region34: #{tpu_custom_call.1} parent=5 // pred_check_branch
      %203 = sbr.rel (%p201) target = $region36
    $region35: #{tpu_custom_call.1} parent=5 // pred_region
      %s204 = ssub.s32 %s8, 2
      // Predicated region
      $region37: #{tpu_custom_call.1} parent=35 // pred_check
        %p205 = pneg %p89
      $region38: #{tpu_custom_call.1} parent=35 // pred_check_branch
        %207 = sbr.rel (%p205) target = $region40
      $region39: #{tpu_custom_call.1} parent=35 // pred_region
        %p208 = scmp.lt.s32.totalorder %s14, 1
        %s209 = scalar_select %p208, %s14, 1
        %s210 = smul.addr %s209, 8
        %s211 = scalar_lea.vmem %s2, %s210
      $region40: #{tpu_custom_call.1} parent=35 // pred_fallthru
        _
    $region36: #{tpu_custom_call.1} parent=5 // pred_fallthru
      _
  $region6: #{tpu_custom_call.1} parent=0 // loop_footer
    %s12 = sadd.s32 1, %s8
  $region7: #{tpu_custom_call.1} parent=0 // loop_footer_branch
    %7 = sbr.rel target = $region3
  $region8: #{tpu_custom_call.1} parent=0 // loop_exit
    _

</llo_original>
